<compile_context>
chip_gen: v5e
topology: v5e:2x2
jax: 0.10.0
libtpu: 0.0.40
codegen_flags: <defaults>
</compile_context>

<pallas_src>
import functools

import jax
import jax.numpy as jnp
from jax.experimental import pallas as pl
from jax.experimental.pallas import tpu as pltpu


def _round_up(x, m):
    return (x + m - 1) // m * m


def _batch_tiling(batch):
    """Pick (padded_batch, batch_tile).

    - tiny B (<=8): one sublane-aligned step (nothing worth splitting).
    - moderate B: exactly 2 steps so both v7x TensorCores get work under the
      "parallel" batch axis; tiles stay large for v5e/v6e.
    - large B: 512-row tiles (amortizes per-step overhead, tall MXU M) with an
      even step count so v7x's two cores split evenly.
    """
    max_tb = 512
    if batch <= 8:
        tb = _round_up(batch, 8)
        return tb, tb
    if batch <= 2 * max_tb:
        tb = _round_up(-(-batch // 2), 8)
        return 2 * tb, tb
    tb = max_tb
    n_steps = -(-batch // tb)
    n_steps += n_steps % 2
    return n_steps * tb, tb


def _decoder_kernel(z_ref, w1_ref, b1_ref, w2_ref, b2_ref, w3_ref, b3_ref,
                    out_ref):
    # z and the weights arrive already in the MXU compute dtype (bf16 by
    # default); accumulation, bias-add and ReLU are f32.
    cdt = w1_ref.dtype

    h = jnp.dot(z_ref[...], w1_ref[...], preferred_element_type=jnp.float32)
    h = jnp.maximum(h + b1_ref[...], 0.0)          # dropout1: identity (eval)

    h = jnp.dot(h.astype(cdt), w2_ref[...], preferred_element_type=jnp.float32)
    h = jnp.maximum(h + b2_ref[...], 0.0)          # dropout2: identity (eval)

    out = jnp.dot(h.astype(cdt), w3_ref[...], preferred_element_type=jnp.float32)
    out_ref[...] = (out + b3_ref[...]).astype(out_ref.dtype)


def prepare_params(params, *, use_bf16=True):
    """One-time weight preparation (hoisted out of the per-call path).

    Casts weights to the MXU dtype and pads ONLY the output feature dim of the
    last layer to a lane-dense multiple of 128 (skipped if already aligned).
    Biases stay f32 (added post-accumulation).
    """
    w1, b1, w2, b2, w3, b3 = params
    d_out = w3.shape[1]
    do_p = d_out if d_out % 128 == 0 else _round_up(d_out, 128)
    wdt = jnp.bfloat16 if use_bf16 else jnp.float32
    if do_p != d_out:
        w3 = jnp.pad(w3, ((0, 0), (0, do_p - d_out)))
        b3 = jnp.pad(b3, ((0, 0), (0, do_p - d_out)))
    return (w1.astype(wdt), b1.astype(jnp.float32),
            w2.astype(wdt), b2.astype(jnp.float32),
            w3.astype(wdt), b3.astype(jnp.float32))


def forward_decoder(z, prepared_params, *, in_features, out_dtype=jnp.float32):
    """Decoder.forward: z.view(B,-1) -> MLP -> reshape(-1, 1, in_features).

    `prepared_params` must come from `prepare_params`.  Pass
    out_dtype=jnp.bfloat16 to halve output writeback if downstream tolerates it.
    """
    w1, b1, w2, b2, w3, b3 = prepared_params
    d_latent, h1 = w1.shape
    h2 = w2.shape[1]
    do_p = w3.shape[1]
    d_out = int(in_features)
    assert do_p == d_out or (do_p % 128 == 0 and do_p == _round_up(d_out, 128))

    B = z.shape[0]
    # Stream activations in the MXU dtype (halves z DMA when bf16).
    z2d = z.reshape(B, -1).astype(w1.dtype)
    assert z2d.shape[1] == d_latent

    B_p, TB = _batch_tiling(B)
    if B_p != B:
        z2d = jnp.pad(z2d, ((0, B_p - B), (0, 0)))
    grid = (B_p // TB,)

    wbytes = jnp.dtype(w1.dtype).itemsize
    zbytes = jnp.dtype(z2d.dtype).itemsize
    obytes = jnp.dtype(out_dtype).itemsize

    # --- VMEM budget (scale-up plan, sized for v7x's 64 MiB first) ---------
    # Weights/biases are single-buffered (constant index map + Buffered(1));
    # the streamed z/output tiles are double-buffered by the Pallas pipeline;
    # intermediates live once per step (f32 + bf16 copy for the next dot).
    weight_vmem = ((d_latent * h1 + h1 * h2 + h2 * do_p) * wbytes
                   + (h1 + h2 + do_p) * 4)
    stream_vmem = 2 * TB * (d_latent * zbytes + do_p * obytes)
    interm_vmem = TB * (h1 + h2) * (4 + wbytes)
    vmem_needed = weight_vmem + stream_vmem + interm_vmem
    vmem_limit = None
    if vmem_needed > 24 * 1024 * 1024:
        vmem_limit = int(min(vmem_needed * 5 // 4, 60 * 1024 * 1024))
        # TODO(synk): if vmem_needed approaches ~48 MiB, N-tile fc2/fc3 with a
        # trailing "arbitrary" grid axis + f32 VMEM accumulator instead of
        # only raising the scoped limit (v7x has 64 MiB physical VMEM).

    # Truthful cost hint: weights counted once (DMA'd once), activations and
    # output per padded batch, flops for the padded batch actually computed.
    cost = pl.CostEstimate(
        flops=2 * B_p * (d_latent * h1 + h1 * h2 + h2 * do_p),
        transcendentals=0,
        bytes_accessed=(B_p * d_latent * zbytes
                        + (w1.size + w2.size + w3.size) * wbytes
                        + (b1.size + b2.size + b3.size) * 4
                        + B_p * do_p * obytes),
    )

    # Weights/biases: DMA'd once (constant index map), single-buffered.
    def _resident(shape):
        return pl.BlockSpec(shape, lambda i: (0, 0),
                            pipeline_mode=pl.Buffered(1))

    out_flat = pl.pallas_call(
        _decoder_kernel,
        out_shape=jax.ShapeDtypeStruct((B_p, do_p), out_dtype),
        grid_spec=pltpu.PrefetchScalarGridSpec(
            num_scalar_prefetch=0,
            grid=grid,
            in_specs=[
                # batch-tiled activations (last dim == full array dim: legal)
                pl.BlockSpec((TB, d_latent), lambda i: (i, 0)),
                _resident((d_latent, h1)),
                _resident((1, h1)),
                _resident((h1, h2)),
                _resident((1, h2)),
                _resident((h2, do_p)),
                _resident((1, do_p)),
            ],
            out_specs=pl.BlockSpec((TB, do_p), lambda i: (i, 0)),
        ),
        compiler_params=pltpu.CompilerParams(
            dimension_semantics=("parallel",),
            vmem_limit_bytes=vmem_limit),
        cost_estimate=cost,
    )(z2d, w1, b1, w2, b2, w3, b3)

    # Only pay the post-kernel slice copy when padding was actually added.
    if B_p != B or do_p != d_out:
        out_flat = out_flat[:B, :d_out]
    return out_flat.reshape(-1, 1, in_features)


def init_params(key, d_latent, hidden_units, in_features):
    """Deterministic init mirroring module __init__: normal(0, 0.001).

    Weights stored TRANSPOSED vs. PyTorch, i.e. (in, out), so y = x @ W + b.
    """
    h0, h1 = hidden_units
    d_out = int(in_features)
    ks = jax.random.split(key, 6)
    std = 0.001
    w1 = std * jax.random.normal(ks[0], (d_latent, h0), jnp.float32)
    b1 = std * jax.random.normal(ks[1], (1, h0), jnp.float32)
    w2 = std * jax.random.normal(ks[2], (h0, h1), jnp.float32)
    b2 = std * jax.random.normal(ks[3], (1, h1), jnp.float32)
    w3 = std * jax.random.normal(ks[4], (h1, d_out), jnp.float32)
    b3 = std * jax.random.normal(ks[5], (1, d_out), jnp.float32)
    return (w1, b1, w2, b2, w3, b3)


def reference_forward(z, params, *, in_features):
    w1, b1, w2, b2, w3, b3 = params
    z2d = z.reshape(z.shape[0], -1)
    h = jnp.maximum(z2d @ w1 + b1, 0.0)
    h = jnp.maximum(h @ w2 + b2, 0.0)
    x = h @ w3 + b3
    return x.reshape(-1, 1, in_features)


if __name__ == "__main__":
    # Small shapes consistent with the module's forward.
    B = 2
    d_latent = 8
    hidden_units = (32, 64)
    in_features = 64          # e.g. n_channels=4 * central_range=16

    key = jax.random.PRNGKey(0)
    k_z, k_p = jax.random.split(key)
    z = jax.random.normal(k_z, (B, d_latent), jnp.float32)
    params = init_params(k_p, d_latent, hidden_units, in_features)

    # Weight pad + bf16 cast done ONCE, outside the per-call path.
    prepared = prepare_params(params, use_bf16=True)

    fwd = jax.jit(functools.partial(forward_decoder, in_features=in_features))
    out = jax.block_until_ready(fwd(z, prepared))

    ref = reference_forward(z, params, in_features=in_features)
    assert out.shape == (B, 1, in_features), out.shape
    # bf16 MXU inputs with f32 accumulation and f32 biases: absolute errors at
    # these scales are ~1e-7 (output is bias-dominated, ~1e-3).
    assert jnp.allclose(out, ref, atol=2e-5, rtol=2e-2), (
        float(jnp.max(jnp.abs(out - ref))))
    print("KERNEL_OK")
</pallas_src>

<mosaic_0001>
module attributes {stable_mosaic.version = 11 : i64} {
  func.func @_decoder_kernel(%arg0: i32, %arg1: memref<8x8xbf16, #tpu.memory_space<vmem>>, %arg2: memref<8x32xbf16, #tpu.memory_space<vmem>>, %arg3: memref<1x32xf32, #tpu.memory_space<vmem>>, %arg4: memref<32x64xbf16, #tpu.memory_space<vmem>>, %arg5: memref<1x64xf32, #tpu.memory_space<vmem>>, %arg6: memref<64x128xbf16, #tpu.memory_space<vmem>>, %arg7: memref<1x128xf32, #tpu.memory_space<vmem>>, %arg8: memref<8x128xf32, #tpu.memory_space<vmem>>) attributes {dimension_semantics = [#tpu.dimension_semantics<parallel>], iteration_bounds = array<i64: 1>, scalar_prefetch = 0 : i64, scratch_operands = 0 : i64, tpu.core_type = #tpu.core_type<tc>, window_params = [{transform_indices = @transform_0, window_bounds = array<i64: 8, 8>}, {pipeline_mode = #tpu.pipeline_mode<synchronous>, transform_indices = @transform_1, window_bounds = array<i64: 8, 32>}, {pipeline_mode = #tpu.pipeline_mode<synchronous>, transform_indices = @transform_2, window_bounds = array<i64: 1, 32>}, {pipeline_mode = #tpu.pipeline_mode<synchronous>, transform_indices = @transform_3, window_bounds = array<i64: 32, 64>}, {pipeline_mode = #tpu.pipeline_mode<synchronous>, transform_indices = @transform_4, window_bounds = array<i64: 1, 64>}, {pipeline_mode = #tpu.pipeline_mode<synchronous>, transform_indices = @transform_5, window_bounds = array<i64: 64, 128>}, {pipeline_mode = #tpu.pipeline_mode<synchronous>, transform_indices = @transform_6, window_bounds = array<i64: 1, 128>}, {transform_indices = @transform_7, window_bounds = array<i64: 8, 128>}]} {
    %c0 = arith.constant 0 : index
    %c0_0 = arith.constant 0 : index
    %0 = vector.load %arg1[%c0, %c0_0] : memref<8x8xbf16, #tpu.memory_space<vmem>>, vector<8x8xbf16>
    %c0_1 = arith.constant 0 : index
    %c0_2 = arith.constant 0 : index
    %1 = vector.load %arg2[%c0_1, %c0_2] : memref<8x32xbf16, #tpu.memory_space<vmem>>, vector<8x32xbf16>
    %cst = arith.constant dense<0.000000e+00> : vector<8x32xf32>
    %2 = tpu.matmul %0, %1, %cst {dimension_numbers = #tpu.dot_dimension_numbers<[1], [0], [0], [1], [0, 0, 1, 1], [], []>} : vector<8x8xbf16>, vector<8x32xbf16>, vector<8x32xf32> -> vector<8x32xf32>
    %c0_3 = arith.constant 0 : index
    %c0_4 = arith.constant 0 : index
    %3 = vector.load %arg3[%c0_3, %c0_4] : memref<1x32xf32, #tpu.memory_space<vmem>>, vector<1x32xf32>
    %4 = vector.broadcast %3 : vector<1x32xf32> to vector<8x32xf32>
    %5 = arith.addf %2, %4 : vector<8x32xf32>
    %cst_5 = arith.constant 0.000000e+00 : f32
    %6 = vector.broadcast %cst_5 : f32 to vector<8x32xf32>
    %7 = arith.maximumf %5, %6 : vector<8x32xf32>
    %8 = arith.truncf %7 : vector<8x32xf32> to vector<8x32xbf16>
    %c0_6 = arith.constant 0 : index
    %c0_7 = arith.constant 0 : index
    %9 = vector.load %arg4[%c0_6, %c0_7] : memref<32x64xbf16, #tpu.memory_space<vmem>>, vector<32x64xbf16>
    %cst_8 = arith.constant dense<0.000000e+00> : vector<8x64xf32>
    %10 = tpu.matmul %8, %9, %cst_8 {dimension_numbers = #tpu.dot_dimension_numbers<[1], [0], [0], [1], [0, 0, 1, 1], [], []>} : vector<8x32xbf16>, vector<32x64xbf16>, vector<8x64xf32> -> vector<8x64xf32>
    %c0_9 = arith.constant 0 : index
    %c0_10 = arith.constant 0 : index
    %11 = vector.load %arg5[%c0_9, %c0_10] : memref<1x64xf32, #tpu.memory_space<vmem>>, vector<1x64xf32>
    %12 = vector.broadcast %11 : vector<1x64xf32> to vector<8x64xf32>
    %13 = arith.addf %10, %12 : vector<8x64xf32>
    %cst_11 = arith.constant 0.000000e+00 : f32
    %14 = vector.broadcast %cst_11 : f32 to vector<8x64xf32>
    %15 = arith.maximumf %13, %14 : vector<8x64xf32>
    %16 = arith.truncf %15 : vector<8x64xf32> to vector<8x64xbf16>
    %c0_12 = arith.constant 0 : index
    %c0_13 = arith.constant 0 : index
    %17 = vector.load %arg6[%c0_12, %c0_13] : memref<64x128xbf16, #tpu.memory_space<vmem>>, vector<64x128xbf16>
    %cst_14 = arith.constant dense<0.000000e+00> : vector<8x128xf32>
    %18 = tpu.matmul %16, %17, %cst_14 {dimension_numbers = #tpu.dot_dimension_numbers<[1], [0], [0], [1], [0, 0, 1, 1], [], []>} : vector<8x64xbf16>, vector<64x128xbf16>, vector<8x128xf32> -> vector<8x128xf32>
    %c0_15 = arith.constant 0 : index
    %c0_16 = arith.constant 0 : index
    %19 = vector.load %arg7[%c0_15, %c0_16] : memref<1x128xf32, #tpu.memory_space<vmem>>, vector<1x128xf32>
    %20 = vector.broadcast %19 : vector<1x128xf32> to vector<8x128xf32>
    %21 = arith.addf %18, %20 : vector<8x128xf32>
    %c0_17 = arith.constant 0 : index
    %c0_18 = arith.constant 0 : index
    %22 = vector.load %arg8[%c0_17, %c0_18] : memref<8x128xf32, #tpu.memory_space<vmem>>, vector<8x128xf32>
    tpu.vector_store %arg8[%c0_17, %c0_18], %21 {strides = array<i32>} : memref<8x128xf32, #tpu.memory_space<vmem>>, vector<8x128xf32>,
    return
  }
  func.func @transform_0(%arg0: i32) -> (i32, i32) {
    %c0_i32 = arith.constant 0 : i32
    %c0_i32_0 = arith.constant 0 : i32
    return %arg0, %c0_i32 : i32, i32
  }
  func.func @transform_1(%arg0: i32) -> (i32, i32) {
    %c0_i32 = arith.constant 0 : i32
    %c0_i32_0 = arith.constant 0 : i32
    %c0_i32_1 = arith.constant 0 : i32
    return %c0_i32, %c0_i32_0 : i32, i32
  }
  func.func @transform_2(%arg0: i32) -> (i32, i32) {
    %c0_i32 = arith.constant 0 : i32
    %c0_i32_0 = arith.constant 0 : i32
    %c0_i32_1 = arith.constant 0 : i32
    return %c0_i32, %c0_i32_0 : i32, i32
  }
  func.func @transform_3(%arg0: i32) -> (i32, i32) {
    %c0_i32 = arith.constant 0 : i32
    %c0_i32_0 = arith.constant 0 : i32
    %c0_i32_1 = arith.constant 0 : i32
    return %c0_i32, %c0_i32_0 : i32, i32
  }
  func.func @transform_4(%arg0: i32) -> (i32, i32) {
    %c0_i32 = arith.constant 0 : i32
    %c0_i32_0 = arith.constant 0 : i32
    %c0_i32_1 = arith.constant 0 : i32
    return %c0_i32, %c0_i32_0 : i32, i32
  }
  func.func @transform_5(%arg0: i32) -> (i32, i32) {
    %c0_i32 = arith.constant 0 : i32
    %c0_i32_0 = arith.constant 0 : i32
    %c0_i32_1 = arith.constant 0 : i32
    return %c0_i32, %c0_i32_0 : i32, i32
  }
  func.func @transform_6(%arg0: i32) -> (i32, i32) {
    %c0_i32 = arith.constant 0 : i32
    %c0_i32_0 = arith.constant 0 : i32
    %c0_i32_1 = arith.constant 0 : i32
    return %c0_i32, %c0_i32_0 : i32, i32
  }
  func.func @transform_7(%arg0: i32) -> (i32, i32) {
    %c0_i32 = arith.constant 0 : i32
    %c0_i32_0 = arith.constant 0 : i32
    return %arg0, %c0_i32 : i32, i32
  }
}

</mosaic_0001>

<llo_original>
// kernel: forward_decoder.1
$region0: #{forward_decoder.1}
  #allocation0 [shape = 'u32[]', space=smem, size = 0x4, offset = 0x4, fixed_abs, tag = 'smem constant byte address 0x4 - core index']
  #allocation1 [shape = 'u32[72,128]{1,0:T(1,128)}', space=vmem, size = 0x9000, scoped, tag = 'internal scratch']
  %s0 = inlined_call_operand.vmem [shape: bf16[8,8], index: 0, kind: input, shape index: {}]
  %s1 = inlined_call_operand.vmem [shape: bf16[8,32], index: 1, kind: input, shape index: {}]
  %s2 = inlined_call_operand.vmem [shape: f32[1,32], index: 2, kind: input, shape index: {}]
  %s3 = inlined_call_operand.hbm [shape: bf16[32,64], index: 3, kind: input, shape index: {}]
  %s4 = inlined_call_operand.vmem [shape: f32[1,64], index: 4, kind: input, shape index: {}]
  %s5 = inlined_call_operand.hbm [shape: bf16[64,128], index: 5, kind: input, shape index: {}]
  %s6 = inlined_call_operand.vmem [shape: f32[1,128], index: 6, kind: input, shape index: {}]
  %s7 = inlined_call_operand.vmem [shape: f32[8,128], index: 7, kind: output, shape index: {}]
  %s8 = sld [smem:[#allocation0]]
  $region46: #{forward_decoder.1} parent=0
    _
  %s10 = ssub.s32 1, %s8
  %s11 = scalar_select 0, %s10, %s8
  $region1: #{forward_decoder.1} parent=0
    #allocation2 [shape = 'u8[8192]{0}', space=vmem, size = 0x2000, scoped, tag = 'input window, operand 3, single buffered']
    #allocation3 [shape = 's32[1]{0}', space=sflag, size = 0x4, scoped, tag = 'scoped memory for forward_decoder.1']
    #allocation4 [shape = 'u8[16384]{0}', space=vmem, size = 0x4000, scoped, tag = 'input window, operand 5, single buffered']
    #allocation5 [shape = 's32[1]{0}', space=sflag, size = 0x4, scoped, tag = 'scoped memory for forward_decoder.1']
    %12 = vsyncpa [#allocation3], 0
    %13 = vsyncpa [#allocation5], 0
    // Predicated region
    $region2: #{forward_decoder.1} parent=1 // pred_check
      _
    $region3: #{forward_decoder.1} parent=1 // pred_check_branch
      %15 = sbr.rel (0) target = $region5
    $region4: #{forward_decoder.1} parent=1 // pred_region
      _
    $region5: #{forward_decoder.1} parent=1 // pred_fallthru
      _
    // Predicated region
    $region6: #{forward_decoder.1} parent=1 // pred_check
      _
    $region7: #{forward_decoder.1} parent=1 // pred_check_branch
      %17 = sbr.rel (0) target = $region9
    $region8: #{forward_decoder.1} parent=1 // pred_region
      _
    $region9: #{forward_decoder.1} parent=1 // pred_fallthru
      _
    // Predicated region
    $region10: #{forward_decoder.1} parent=1 // pred_check
      _
    $region11: #{forward_decoder.1} parent=1 // pred_check_branch
      %19 = sbr.rel (0) target = $region13
    $region12: #{forward_decoder.1} parent=1 // pred_region
      _
    $region13: #{forward_decoder.1} parent=1 // pred_fallthru
      _
    // Predicated region
    $region14: #{forward_decoder.1} parent=1 // pred_check
      _
    $region15: #{forward_decoder.1} parent=1 // pred_check_branch
      %21 = sbr.rel (0) target = $region17
    $region16: #{forward_decoder.1} parent=1 // pred_region
      %23 = vsyncadd [#allocation3], 0
      %s24 = sshll.u32 %s3, 4
      %s25 = int_to_ptr.hbm [resolvable:$true] %s24
      %s26 = sshll.u32 [#allocation2], 4
      %s27 = int_to_ptr.vmem [resolvable:$true] %s26
      %32 = dma.hbm_to_vmem [thread:$0]  %s25, 256, %s27, [#allocation3], 64, 64, 4
    $region17: #{forward_decoder.1} parent=1 // pred_fallthru
      _
    // Predicated region
    $region18: #{forward_decoder.1} parent=1 // pred_check
      _
    $region19: #{forward_decoder.1} parent=1 // pred_check_branch
      %34 = sbr.rel (0) target = $region21
    $region20: #{forward_decoder.1} parent=1 // pred_region
      _
    $region21: #{forward_decoder.1} parent=1 // pred_fallthru
      _
    // Predicated region
    $region22: #{forward_decoder.1} parent=1 // pred_check
      _
    $region23: #{forward_decoder.1} parent=1 // pred_check_branch
      %36 = sbr.rel (0) target = $region25
    $region24: #{forward_decoder.1} parent=1 // pred_region
      %38 = vsyncadd [#allocation5], 0
      %s39 = sshll.u32 %s5, 4
      %s40 = int_to_ptr.hbm [resolvable:$true] %s39
      %s41 = sshll.u32 [#allocation4], 4
      %s42 = int_to_ptr.vmem [resolvable:$true] %s41
      %47 = dma.hbm_to_vmem [thread:$0]  %s40, 512, %s42, [#allocation5], 64, 64, 4
    $region25: #{forward_decoder.1} parent=1 // pred_fallthru
      _
    // Predicated region
    $region26: #{forward_decoder.1} parent=1 // pred_check
      _
    $region27: #{forward_decoder.1} parent=1 // pred_check_branch
      %49 = sbr.rel (0) target = $region29
    $region28: #{forward_decoder.1} parent=1 // pred_region
      _
    $region29: #{forward_decoder.1} parent=1 // pred_fallthru
      _
    // Predicated region
    $region30: #{forward_decoder.1} parent=1 // pred_check
      _
    $region31: #{forward_decoder.1} parent=1 // pred_check_branch
      %51 = sbr.rel (0) target = $region33
    $region32: #{forward_decoder.1} parent=1 // pred_region
      %53 = dma.done [#allocation3], 256
    $region33: #{forward_decoder.1} parent=1 // pred_fallthru
      _
    // Predicated region
    $region34: #{forward_decoder.1} parent=1 // pred_check
      _
    $region35: #{forward_decoder.1} parent=1 // pred_check_branch
      %55 = sbr.rel (0) target = $region37
    $region36: #{forward_decoder.1} parent=1 // pred_region
      %57 = dma.done [#allocation5], 512
    $region37: #{forward_decoder.1} parent=1 // pred_fallthru
      _
    %v59 = vld [vmem:[%s0] sm:$0xf]
    %v60 = vld [vmem:[%s1] sm:$0xf]
    %v61 = vld [vmem:[%s2] sm:$0x1]
    %v63 = vperm.slane %v61, 0
    %vm65 = vcmask 64512
    %v67 = vsel %vm65, %v59, 0
    %vm69 = vcmask 1043456
    %v71 = vsel %vm69, %v60, 0
    %73 = vmatpush.bf16.msra.mxu0 0
    %74 = vmatpush.bf16.msra.mxu0 0
    %75 = vmatpush.bf16.msra.mxu0 0
    %76 = vmatpush.bf16.msra.mxu0 0
    %77 = vmatpush.bf16.msra.mxu0 0
    %78 = vmatpush.bf16.msra.mxu0 0
    %79 = vmatpush.bf16.msra.mxu0 0
    %80 = vmatpush.bf16.msra.mxu0 %v71
    %81 = vmatmul.bf16.gmra.mxu0 %v67
    %v82 = vpop.f32.mrf.mxu0
    %v83 = vadd.f32 %v63, %v82
    %v84 = vpop.f32.mrf.mxu0
    %85 = vdwg.mxu0
    %v86 = vmax.f32 %v83, 0.0
    %v87 = vpack.c.bf16 %v86, %v86
    %v88 = vld [vmem:[#allocation2] sm:$0xf]
    %v89 = vld [vmem:[#allocation2 + $0x4] sm:$0xf]
    %v90 = vld [vmem:[#allocation2 + $0x8] sm:$0xf]
    %v91 = vld [vmem:[#allocation2 + $0xc] sm:$0xf]
    %v92 = vld [vmem:[%s4] sm:$0x1]
    %v94 = vperm.slane %v92, 0
    %v100 = vunpack.c.l.b16 %v88
    %v101 = vunpack.c.l.b16 %v89
    %v102 = vunpack.c.l.b16 %v90
    %v103 = vunpack.c.l.b16 %v91
    %v104 = vpack.c.b16 %v101, %v100
    %v105 = vpack.c.b16 %v103, %v102
    %vm108 = vcmask 261120
    %v110 = vsel %vm108, %v87, 0
    %112 = vmatpush.bf16.msra.mxu0 0
    %113 = vmatpush.bf16.msra.mxu0 0
    %114 = vmatpush.bf16.msra.mxu0 0
    %115 = vmatpush.bf16.msra.mxu0 0
    %116 = vmatpush.bf16.msra.mxu0 0
    %117 = vmatpush.bf16.msra.mxu0 0
    %118 = vmatpush.bf16.msra.mxu0 %v105
    %119 = vmatpush.bf16.msra.mxu0 %v104
    %120 = vmatmul.bf16.gmra.mxu0 %v110
    %v121 = vpop.f32.mrf.mxu0
    %v122 = vadd.f32 %v94, %v121
    %v123 = vpop.f32.mrf.mxu0
    %124 = vdwg.mxu0
    %v125 = vmax.f32 %v122, 0.0
    %v126 = vpack.c.bf16 %v125, %v125
    %v127 = vld [vmem:[#allocation4] sm:$0xf]
    %v128 = vld [vmem:[#allocation4 + $0x4] sm:$0xf]
    %v129 = vld [vmem:[#allocation4 + $0x8] sm:$0xf]
    %v130 = vld [vmem:[#allocation4 + $0xc] sm:$0xf]
    %v131 = vld [vmem:[#allocation4 + $0x10] sm:$0xf]
    %v132 = vld [vmem:[#allocation4 + $0x14] sm:$0xf]
    %v133 = vld [vmem:[#allocation4 + $0x18] sm:$0xf]
    %v134 = vld [vmem:[#allocation4 + $0x1c] sm:$0xf]
    %v135 = vld [vmem:[%s6] sm:$0x1]
    %v137 = vperm.slane %v135, 0
    %v147 = vunpack.c.l.b16 %v127
    %v148 = vunpack.c.l.b16 %v128
    %v149 = vunpack.c.l.b16 %v129
    %v150 = vunpack.c.l.b16 %v130
    %v151 = vunpack.c.l.b16 %v131
    %v152 = vunpack.c.l.b16 %v132
    %v153 = vunpack.c.l.b16 %v133
    %v154 = vunpack.c.l.b16 %v134
    %v155 = vpack.c.b16 %v148, %v147
    %v156 = vpack.c.b16 %v150, %v149
    %v157 = vpack.c.b16 %v152, %v151
    %v158 = vpack.c.b16 %v154, %v153
    %vm163 = vcmask 523264
    %v165 = vsel %vm163, %v126, 0
    %167 = vmatpush.bf16.msra.mxu0 0
    %168 = vmatpush.bf16.msra.mxu0 0
    %169 = vmatpush.bf16.msra.mxu0 0
    %170 = vmatpush.bf16.msra.mxu0 0
    %171 = vmatpush.bf16.msra.mxu0 %v158
    %172 = vmatpush.bf16.msra.mxu0 %v157
    %173 = vmatpush.bf16.msra.mxu0 %v156
    %174 = vmatpush.bf16.msra.mxu0 %v155
    %175 = vmatmul.bf16.gmra.mxu0 %v165
    %v176 = vpop.f32.mrf.mxu0
    %v177 = vadd.f32 %v137, %v176
    %v178 = vpop.f32.mrf.mxu0
    %179 = vdwg.mxu0
    %180 = vst [vmem:[%s7] sm:$0xff] %v177
    // Predicated region
    $region38: #{forward_decoder.1} parent=1 // pred_check
      _
    $region39: #{forward_decoder.1} parent=1 // pred_check_branch
      %182 = sbr.rel (0) target = $region41
    $region40: #{forward_decoder.1} parent=1 // pred_region
      _
    $region41: #{forward_decoder.1} parent=1 // pred_fallthru
      _
    // Predicated region
    $region42: #{forward_decoder.1} parent=1 // pred_check
      _
    $region43: #{forward_decoder.1} parent=1 // pred_check_branch
      %184 = sbr.rel (0) target = $region45
    $region44: #{forward_decoder.1} parent=1 // pred_region
      _
    $region45: #{forward_decoder.1} parent=1 // pred_fallthru
      _
    %185 = vsyncpa [#allocation3], 1
    %186 = vsyncpa [#allocation5], 1

</llo_original>
